<compile_context>
chip_gen: v5e
topology: v5e:2x2
jax: 0.10.0
libtpu: 0.0.40
codegen_flags: <defaults>
</compile_context>

<pallas_src>
import functools
import math

import jax
import jax.numpy as jnp
from jax.experimental import pallas as pl
from jax.experimental.pallas import tpu as pltpu


# --------------------------------------------------------------------------------------
# Hardware-generation parameters
# --------------------------------------------------------------------------------------

def _chip_params():
    """Generation-gated tiling knobs (see module header)."""
    kind = ""
    vmem_phys = None
    try:
        kind = (getattr(jax.devices()[0], "device_kind", "") or "").lower()
    except Exception:
        pass
    try:
        info = pltpu.get_tpu_info()
        vmem_phys = getattr(info, "vmem_capacity_bytes", None)
    except Exception:
        vmem_phys = None

    looks_v7 = ("v7" in kind) or ("7x" in kind) or (
        vmem_phys is not None and vmem_phys <= (96 << 20))
    if looks_v7:
        # 64 MiB physical VMEM per TensorCore, 2 TCs behind the "parallel" grid axis.
        return dict(vmem_limit=48 << 20, vmem_budget=40 << 20,
                    target_tile=4 << 20, min_steps=4)
    if vmem_phys is None and not kind:
        # Unknown hardware: conservative settings that are safe on every generation.
        return dict(vmem_limit=48 << 20, vmem_budget=32 << 20,
                    target_tile=2 << 20, min_steps=1)
    # v5e / v6e: single TensorCore, 128 MiB VMEM -> no grid-step cap, larger headroom.
    return dict(vmem_limit=96 << 20, vmem_budget=48 << 20,
                target_tile=4 << 20, min_steps=1)


def _padded_bytes(shape, itemsize):
    """Approximate VMEM footprint of a 2-D array ((8,128)-tiled layout)."""
    sub = -(-shape[-2] // 8) * 8
    lane = -(-shape[-1] // 128) * 128
    return sub * lane * itemsize


def _choose_block_batch(B, per_row_one_stream, per_row_total_vmem, resident_bytes,
                        *, target_tile, vmem_budget, min_steps, need_mult8):
    """Pick rows-per-grid-step (bt) and the padded batch size.  Returns (None, None) if the
    2-D sublane constraint (bt % 8 == 0) cannot be met within the VMEM budget."""
    avail = max(vmem_budget - resident_bytes, 1 << 20)
    bt = min(max(1, target_tile // max(per_row_one_stream, 1)),
             max(1, avail // max(per_row_total_vmem, 1)),
             B)
    # Keep >= min_steps grid steps (v7x: >=2 per TensorCore) only when the batch is big
    # enough that this does not force tiny (<8-row) tiles.
    if min_steps > 1 and B >= min_steps * 8:
        bt = min(bt, max(1, B // min_steps))
    if bt >= B:
        return B, B                    # single step: block == (padded) full array
    if need_mult8:
        if bt < 8:
            return None, None          # cannot satisfy (8,128) sublane rule for 2-D blocks
        bt = (bt // 8) * 8
    b_pad = -(-B // bt) * bt
    return bt, b_pad


# --------------------------------------------------------------------------------------
# Kernels
# --------------------------------------------------------------------------------------

def _folded_kernel(q_ref, kf_ref, vf_ref, texp_ref, sexp_ref, sexp_t_ref, o_ref, *, dim):
    """Lane-dense path (D not a multiple of 128, L*D is).

    q: (bt, D); kf/vf/o: (bt, L*D) keys/values/output folded lane-dense.
    texp:   (D, L*D)  one-hot, texp[d, l*D+d]   = 1  (query  -> folded lanes)
    sexp:   (L, L*D)  one-hot, sexp[l, l*D+d]   = 1  (weight -> folded lanes)
    sexp_t: (L*D, L)  transpose of sexp              (segmented score reduction)
    All expanders are precomputed in the wrapper and VMEM-resident (constant index_map).
    """
    scale = 1.0 / math.sqrt(dim)
    q = q_ref[...]
    kf = kf_ref[...]
    texp = texp_ref[...]
    sexp = sexp_ref[...]
    sexp_t = sexp_t_ref[...]

    # q_rep[b, l*D + d] = q[b, d]  (tiny MXU matmul; avoids a minor-dims reshape/tile).
    q_rep = jnp.dot(q.astype(texp.dtype), texp, preferred_element_type=jnp.float32)

    # Segmented reduction on the MXU: scores[b, l] = sum_d kf[b, l*D+d] * q[b, d].
    prod = (kf * q_rep.astype(kf.dtype)).astype(sexp_t.dtype)
    scores = jnp.dot(prod, sexp_t, preferred_element_type=jnp.float32) * scale   # (bt, L)

    # Softmax over the key axis (dim=1 of the PyTorch reference), lane-major.
    m = jnp.max(scores, axis=-1, keepdims=True)
    p = jnp.exp(scores - m)
    denom = jnp.sum(p, axis=-1, keepdims=True)
    att = p * pl.reciprocal(denom, approx=True)                                  # (bt, L) f32

    # att_rep[b, l*D + d] = att[b, l]; multiply against V in f32, cast once at the store.
    att_rep = jnp.dot(att.astype(sexp.dtype), sexp, preferred_element_type=jnp.float32)
    o_ref[...] = (att_rep * vf_ref[...]).astype(o_ref.dtype)


def _natural_kernel(q_ref, k_ref, v_ref, o_ref, *, dim):
    """Fallback path (D already a multiple of 128, or lane-dense folding impractical).
    q: (bt, 1, D); k/v/o: (bt, L, D)."""
    scale = 1.0 / math.sqrt(dim)
    q = q_ref[...]
    k = k_ref[...]
    # Squeezed lane-major (bt, L) scores (avoid 1-lane-wide vregs in the softmax).
    scores = jnp.sum(k * q, axis=-1, dtype=jnp.float32) * scale                  # (bt, L)
    m = jnp.max(scores, axis=-1, keepdims=True)
    p = jnp.exp(scores - m)
    denom = jnp.sum(p, axis=-1, keepdims=True)
    att = p * pl.reciprocal(denom, approx=True)                                  # (bt, L) f32
    o_ref[...] = (att[:, :, None] * v_ref[...]).astype(o_ref.dtype)


# --------------------------------------------------------------------------------------
# Wrapper
# --------------------------------------------------------------------------------------

def scaled_dot_product_attention(query, keys, values):
    """query: (B, D); keys, values: (B, L, D) -> attention-weighted values (B, L, D)."""
    B, L, D = keys.shape
    assert query.shape == (B, D)
    assert values.shape == (B, L, D)

    params = _chip_params()
    itemsize = max(jnp.dtype(keys.dtype).itemsize, jnp.dtype(values.dtype).itemsize)

    compiler_params = pltpu.CompilerParams(
        dimension_semantics=("parallel",),          # independent batch blocks -> megacore-shardable
        vmem_limit_bytes=params["vmem_limit"],
    )

    # ------------------------------------------------------------------ lane-dense folded path
    exp_dtype = jnp.bfloat16 if itemsize < 4 else jnp.float32
    exp_itemsize = jnp.dtype(exp_dtype).itemsize
    expander_resident = (_padded_bytes((D, L * D), exp_itemsize)
                         + _padded_bytes((L, L * D), exp_itemsize)
                         + _padded_bytes((L * D, L), exp_itemsize))
    use_folded = (D % 128 != 0) and ((L * D) % 128 == 0) and (expander_resident <= (1 << 20))

    if use_folded:
        row = L * D
        per_row_one_stream = row * itemsize                       # one of kf / vf / out
        per_row_total_vmem = 2 * 3 * row * itemsize + 3 * row * 4  # dbl-buffered streams + f32 temps
        bt, b_pad = _choose_block_batch(
            B, per_row_one_stream, per_row_total_vmem, 2 * expander_resident,
            target_tile=params["target_tile"], vmem_budget=params["vmem_budget"],
            min_steps=params["min_steps"], need_mult8=True)
        if bt is not None:
            qf = query
            kf = keys.reshape(B, row)        # free, contiguous
            vf = values.reshape(B, row)
            if b_pad > B:                    # zero rows are harmless through the softmax
                pad = ((0, b_pad - B), (0, 0))
                qf, kf, vf = jnp.pad(qf, pad), jnp.pad(kf, pad), jnp.pad(vf, pad)

            lane = jnp.arange(row, dtype=jnp.int32)
            texp = (lane[None, :] % D == jnp.arange(D, dtype=jnp.int32)[:, None]).astype(exp_dtype)
            sexp = (lane[None, :] // D == jnp.arange(L, dtype=jnp.int32)[:, None]).astype(exp_dtype)
            sexp_t = sexp.T                  # built once in the wrapper, not per grid step

            out = pl.pallas_call(
                functools.partial(_folded_kernel, dim=D),
                out_shape=jax.ShapeDtypeStruct((b_pad, row), values.dtype),
                grid=(b_pad // bt,),
                in_specs=[
                    pl.BlockSpec((bt, D), lambda b: (b, 0)),
                    pl.BlockSpec((bt, row), lambda b: (b, 0)),
                    pl.BlockSpec((bt, row), lambda b: (b, 0)),
                    pl.BlockSpec((D, row), lambda b: (0, 0)),     # resident expanders
                    pl.BlockSpec((L, row), lambda b: (0, 0)),
                    pl.BlockSpec((row, L), lambda b: (0, 0)),
                ],
                out_specs=pl.BlockSpec((bt, row), lambda b: (b, 0)),
                compiler_params=compiler_params,
            )(qf, kf, vf, texp, sexp, sexp_t)
            return out[:B].reshape(B, L, D)

    # ------------------------------------------------------------------ natural (lane-padded) path
    # TODO(synk): for very long L where a full (bt, L, D) tile no longer fits VMEM (hit first on
    # v7x), this would need an L grid axis with an online softmax; not needed at these shapes.
    d_pad = -(-D // 128) * 128
    per_row_one_stream = L * D * itemsize
    per_row_total_vmem = 2 * 3 * L * d_pad * itemsize + 2 * L * d_pad * 4
    bt, b_pad = _choose_block_batch(
        B, per_row_one_stream, per_row_total_vmem, 0,
        target_tile=params["target_tile"], vmem_budget=params["vmem_budget"],
        min_steps=params["min_steps"], need_mult8=False)

    q3, k3, v3 = query.reshape(B, 1, D), keys, values
    if b_pad > B:
        pad = ((0, b_pad - B), (0, 0), (0, 0))
        q3, k3, v3 = jnp.pad(q3, pad), jnp.pad(k3, pad), jnp.pad(v3, pad)

    out = pl.pallas_call(
        functools.partial(_natural_kernel, dim=D),
        out_shape=jax.ShapeDtypeStruct((b_pad, L, D), values.dtype),
        grid=(b_pad // bt,),
        in_specs=[
            pl.BlockSpec((bt, 1, D), lambda b: (b, 0, 0)),
            pl.BlockSpec((bt, L, D), lambda b: (b, 0, 0)),
            pl.BlockSpec((bt, L, D), lambda b: (b, 0, 0)),
        ],
        out_specs=pl.BlockSpec((bt, L, D), lambda b: (b, 0, 0)),
        compiler_params=compiler_params,
    )(q3, k3, v3)
    return out[:B]


# --------------------------------------------------------------------------------------
# Reference & test
# --------------------------------------------------------------------------------------

def _reference(query, keys, values):
    # Pure-JAX reference mirroring the intended PyTorch forward.
    B, L, D = keys.shape
    att = jnp.einsum("bd,bld->bl", query, keys) / jnp.sqrt(jnp.float32(D))
    att = jax.nn.softmax(att, axis=1)
    return att[:, :, None] * values


if __name__ == "__main__":
    B, L, D = 2, 8, 32  # batch, number of keys, hidden dim
    key = jax.random.PRNGKey(0)
    kq, kk, kv = jax.random.split(key, 3)
    query = jax.random.normal(kq, (B, D), dtype=jnp.float32)
    keys = jax.random.normal(kk, (B, L, D), dtype=jnp.float32)
    values = jax.random.normal(kv, (B, L, D), dtype=jnp.float32)

    out = scaled_dot_product_attention(query, keys, values)
    out = jax.block_until_ready(out)

    ref = _reference(query, keys, values)
    assert out.shape == (B, L, D)
    # approx-reciprocal softmax denominator (~1e-3) plus default-precision MXU passes on the f32
    # segmented-score matmul mean rows don't sum to exactly 1; this tolerance still catches any
    # real bug (a wrong softmax axis or scaling would be O(1) off).
    assert jnp.allclose(out, ref, atol=2e-2, rtol=2e-2), "mismatch vs. reference"

    print("KERNEL_OK")
</pallas_src>

<mosaic_0001>
module attributes {stable_mosaic.version = 11 : i64} {
  func.func @_folded_kernel(%arg0: i32, %arg1: memref<2x32xf32, #tpu.memory_space<vmem>>, %arg2: memref<2x256xf32, #tpu.memory_space<vmem>>, %arg3: memref<2x256xf32, #tpu.memory_space<vmem>>, %arg4: memref<32x256xf32, #tpu.memory_space<vmem>>, %arg5: memref<8x256xf32, #tpu.memory_space<vmem>>, %arg6: memref<256x8xf32, #tpu.memory_space<vmem>>, %arg7: memref<2x256xf32, #tpu.memory_space<vmem>>) attributes {dimension_semantics = [#tpu.dimension_semantics<parallel>], iteration_bounds = array<i64: 1>, scalar_prefetch = 0 : i64, scratch_operands = 0 : i64, tpu.core_type = #tpu.core_type<tc>, window_params = [{transform_indices = @transform_0, window_bounds = array<i64: 2, 32>}, {transform_indices = @transform_1, window_bounds = array<i64: 2, 256>}, {transform_indices = @transform_2, window_bounds = array<i64: 2, 256>}, {pipeline_mode = #tpu.pipeline_mode<synchronous>, transform_indices = @transform_3, window_bounds = array<i64: 32, 256>}, {pipeline_mode = #tpu.pipeline_mode<synchronous>, transform_indices = @transform_4, window_bounds = array<i64: 8, 256>}, {pipeline_mode = #tpu.pipeline_mode<synchronous>, transform_indices = @transform_5, window_bounds = array<i64: 256, 8>}, {transform_indices = @transform_6, window_bounds = array<i64: 2, 256>}]} {
    %c0 = arith.constant 0 : index
    %c0_0 = arith.constant 0 : index
    %0 = vector.load %arg1[%c0, %c0_0] : memref<2x32xf32, #tpu.memory_space<vmem>>, vector<2x32xf32>
    %c0_1 = arith.constant 0 : index
    %c0_2 = arith.constant 0 : index
    %1 = vector.load %arg2[%c0_1, %c0_2] : memref<2x256xf32, #tpu.memory_space<vmem>>, vector<2x256xf32>
    %c0_3 = arith.constant 0 : index
    %c0_4 = arith.constant 0 : index
    %2 = vector.load %arg4[%c0_3, %c0_4] : memref<32x256xf32, #tpu.memory_space<vmem>>, vector<32x256xf32>
    %c0_5 = arith.constant 0 : index
    %c0_6 = arith.constant 0 : index
    %3 = vector.load %arg5[%c0_5, %c0_6] : memref<8x256xf32, #tpu.memory_space<vmem>>, vector<8x256xf32>
    %c0_7 = arith.constant 0 : index
    %c0_8 = arith.constant 0 : index
    %4 = vector.load %arg6[%c0_7, %c0_8] : memref<256x8xf32, #tpu.memory_space<vmem>>, vector<256x8xf32>
    %cst = arith.constant dense<0.000000e+00> : vector<2x256xf32>
    %5 = tpu.matmul %0, %2, %cst {dimension_numbers = #tpu.dot_dimension_numbers<[1], [0], [0], [1], [0, 0, 1, 1], [], []>} : vector<2x32xf32>, vector<32x256xf32>, vector<2x256xf32> -> vector<2x256xf32>
    %6 = arith.mulf %1, %5 : vector<2x256xf32>
    %cst_9 = arith.constant dense<0.000000e+00> : vector<2x8xf32>
    %7 = tpu.matmul %6, %4, %cst_9 {dimension_numbers = #tpu.dot_dimension_numbers<[1], [0], [0], [1], [0, 0, 1, 1], [], []>} : vector<2x256xf32>, vector<256x8xf32>, vector<2x8xf32> -> vector<2x8xf32>
    %cst_10 = arith.constant 0.176776692 : f32
    %8 = vector.broadcast %cst_10 : f32 to vector<2x8xf32>
    %9 = arith.mulf %7, %8 : vector<2x8xf32>
    %cst_11 = arith.constant dense<0xFF800000> : vector<2xf32>
    %10 = vector.multi_reduction <maximumf>, %9, %cst_11 [1] : vector<2x8xf32> to vector<2xf32>
    %11 = vector.shape_cast %10 : vector<2xf32> to vector<2x1xf32>
    %12 = vector.broadcast %11 : vector<2x1xf32> to vector<2x8xf32>
    %13 = arith.subf %9, %12 : vector<2x8xf32>
    %14 = math.exp %13 : vector<2x8xf32>
    %cst_12 = arith.constant dense<0.000000e+00> : vector<2xf32>
    %15 = vector.multi_reduction <add>, %14, %cst_12 [1] : vector<2x8xf32> to vector<2xf32>
    %16 = vector.shape_cast %15 : vector<2xf32> to vector<2x1xf32>
    %17 = tpu.reciprocal %16 {approx = true} : vector<2x1xf32> -> vector<2x1xf32>
    %18 = vector.broadcast %17 : vector<2x1xf32> to vector<2x8xf32>
    %19 = arith.mulf %14, %18 : vector<2x8xf32>
    %cst_13 = arith.constant dense<0.000000e+00> : vector<2x256xf32>
    %20 = tpu.matmul %19, %3, %cst_13 {dimension_numbers = #tpu.dot_dimension_numbers<[1], [0], [0], [1], [0, 0, 1, 1], [], []>} : vector<2x8xf32>, vector<8x256xf32>, vector<2x256xf32> -> vector<2x256xf32>
    %c0_14 = arith.constant 0 : index
    %c0_15 = arith.constant 0 : index
    %21 = vector.load %arg3[%c0_14, %c0_15] : memref<2x256xf32, #tpu.memory_space<vmem>>, vector<2x256xf32>
    %22 = arith.mulf %20, %21 : vector<2x256xf32>
    %c0_16 = arith.constant 0 : index
    %c0_17 = arith.constant 0 : index
    %23 = vector.load %arg7[%c0_16, %c0_17] : memref<2x256xf32, #tpu.memory_space<vmem>>, vector<2x256xf32>
    tpu.vector_store %arg7[%c0_16, %c0_17], %22 {strides = array<i32>} : memref<2x256xf32, #tpu.memory_space<vmem>>, vector<2x256xf32>,
    return
  }
  func.func @transform_0(%arg0: i32) -> (i32, i32) {
    %c0_i32 = arith.constant 0 : i32
    %c0_i32_0 = arith.constant 0 : i32
    return %arg0, %c0_i32 : i32, i32
  }
  func.func @transform_1(%arg0: i32) -> (i32, i32) {
    %c0_i32 = arith.constant 0 : i32
    %c0_i32_0 = arith.constant 0 : i32
    return %arg0, %c0_i32 : i32, i32
  }
  func.func @transform_2(%arg0: i32) -> (i32, i32) {
    %c0_i32 = arith.constant 0 : i32
    %c0_i32_0 = arith.constant 0 : i32
    return %arg0, %c0_i32 : i32, i32
  }
  func.func @transform_3(%arg0: i32) -> (i32, i32) {
    %c0_i32 = arith.constant 0 : i32
    %c0_i32_0 = arith.constant 0 : i32
    %c0_i32_1 = arith.constant 0 : i32
    return %c0_i32, %c0_i32_0 : i32, i32
  }
  func.func @transform_4(%arg0: i32) -> (i32, i32) {
    %c0_i32 = arith.constant 0 : i32
    %c0_i32_0 = arith.constant 0 : i32
    %c0_i32_1 = arith.constant 0 : i32
    return %c0_i32, %c0_i32_0 : i32, i32
  }
  func.func @transform_5(%arg0: i32) -> (i32, i32) {
    %c0_i32 = arith.constant 0 : i32
    %c0_i32_0 = arith.constant 0 : i32
    %c0_i32_1 = arith.constant 0 : i32
    return %c0_i32, %c0_i32_0 : i32, i32
  }
  func.func @transform_6(%arg0: i32) -> (i32, i32) {
    %c0_i32 = arith.constant 0 : i32
    %c0_i32_0 = arith.constant 0 : i32
    return %arg0, %c0_i32 : i32, i32
  }
}

</mosaic_0001>

<llo_original>
// kernel: tpu_custom_call.1
$region0: #{tpu_custom_call.1}
  #allocation0 [shape = 'u32[]', space=smem, size = 0x4, offset = 0x4, fixed_abs, tag = 'smem constant byte address 0x4 - core index']
  #allocation1 [shape = 'u32[72,128]{1,0:T(1,128)}', space=vmem, size = 0x9000, scoped, tag = 'internal scratch']
  %s0 = inlined_call_operand.vmem [shape: f32[2,32], index: 0, kind: input, shape index: {}]
  %s1 = inlined_call_operand.vmem [shape: f32[2,256], index: 1, kind: input, shape index: {}]
  %s2 = inlined_call_operand.vmem [shape: f32[2,256], index: 2, kind: input, shape index: {}]
  %s3 = inlined_call_operand.vmem [shape: f32[32,256], index: 3, kind: input, shape index: {}]
  %s4 = inlined_call_operand.vmem [shape: f32[8,256], index: 4, kind: input, shape index: {}]
  %s5 = inlined_call_operand.vmem [shape: f32[256,8], index: 5, kind: input, shape index: {}]
  %s6 = inlined_call_operand.hbm [shape: f32[2,256], index: 6, kind: output, shape index: {}]
  %s7 = sld [smem:[#allocation0]]
  $region34: #{tpu_custom_call.1} parent=0
    _
  %s9 = ssub.s32 1, %s7
  %s10 = scalar_select 0, %s9, %s7
  $region1: #{tpu_custom_call.1} parent=0
    #allocation2 [shape = 'u8[2048]{0}', space=vmem, size = 0x800, scoped, tag = 'output window, operand 0, single buffered']
    #allocation3 [shape = 's32[1]{0}', space=sflag, size = 0x4, scoped, tag = 'scoped memory for tpu_custom_call.1']
    %11 = vsyncpa [#allocation3], 0
    // Predicated region
    $region2: #{tpu_custom_call.1} parent=1 // pred_check
      _
    $region3: #{tpu_custom_call.1} parent=1 // pred_check_branch
      %13 = sbr.rel (0) target = $region5
    $region4: #{tpu_custom_call.1} parent=1 // pred_region
      _
    $region5: #{tpu_custom_call.1} parent=1 // pred_fallthru
      _
    // Predicated region
    $region6: #{tpu_custom_call.1} parent=1 // pred_check
      _
    $region7: #{tpu_custom_call.1} parent=1 // pred_check_branch
      %15 = sbr.rel (0) target = $region9
    $region8: #{tpu_custom_call.1} parent=1 // pred_region
      _
    $region9: #{tpu_custom_call.1} parent=1 // pred_fallthru
      _
    // Predicated region
    $region10: #{tpu_custom_call.1} parent=1 // pred_check
      _
    $region11: #{tpu_custom_call.1} parent=1 // pred_check_branch
      %17 = sbr.rel (0) target = $region13
    $region12: #{tpu_custom_call.1} parent=1 // pred_region
      _
    $region13: #{tpu_custom_call.1} parent=1 // pred_fallthru
      _
    // Predicated region
    $region14: #{tpu_custom_call.1} parent=1 // pred_check
      _
    $region15: #{tpu_custom_call.1} parent=1 // pred_check_branch
      %19 = sbr.rel (0) target = $region17
    $region16: #{tpu_custom_call.1} parent=1 // pred_region
      _
    $region17: #{tpu_custom_call.1} parent=1 // pred_fallthru
      _
    // Predicated region
    $region18: #{tpu_custom_call.1} parent=1 // pred_check
      _
    $region19: #{tpu_custom_call.1} parent=1 // pred_check_branch
      %21 = sbr.rel (0) target = $region21
    $region20: #{tpu_custom_call.1} parent=1 // pred_region
      _
    $region21: #{tpu_custom_call.1} parent=1 // pred_fallthru
      _
    // Predicated region
    $region22: #{tpu_custom_call.1} parent=1 // pred_check
      _
    $region23: #{tpu_custom_call.1} parent=1 // pred_check_branch
      %23 = sbr.rel (0) target = $region25
    $region24: #{tpu_custom_call.1} parent=1 // pred_region
      _
    $region25: #{tpu_custom_call.1} parent=1 // pred_fallthru
      _
    %v24 = vld [vmem:[%s0] sm:$0x3]
    %v25 = vld [vmem:[%s1] sm:$0xf]
    %v26 = vld [vmem:[%s3] sm:$0xff]
    %v27 = vld [vmem:[%s3 + $0x8] sm:$0xff]
    %v28 = vld [vmem:[%s3 + $0x10] sm:$0xff]
    %v29 = vld [vmem:[%s3 + $0x18] sm:$0xff]
    %v30 = vld [vmem:[%s3 + $0x20] sm:$0xff]
    %v31 = vld [vmem:[%s3 + $0x28] sm:$0xff]
    %v32 = vld [vmem:[%s3 + $0x30] sm:$0xff]
    %v33 = vld [vmem:[%s3 + $0x38] sm:$0xff]
    %v34 = vld [vmem:[%s4] sm:$0xff]
    %v35 = vld [vmem:[%s4 + $0x8] sm:$0xff]
    %v36 = vld [vmem:[%s5] sm:$0xff]
    %v37 = vld [vmem:[%s5 + $0x8] sm:$0xff]
    %v38 = vld [vmem:[%s5 + $0x10] sm:$0xff]
    %v39 = vld [vmem:[%s5 + $0x18] sm:$0xff]
    %v40 = vld [vmem:[%s5 + $0x20] sm:$0xff]
    %v41 = vld [vmem:[%s5 + $0x28] sm:$0xff]
    %v42 = vld [vmem:[%s5 + $0x30] sm:$0xff]
    %v43 = vld [vmem:[%s5 + $0x38] sm:$0xff]
    %v44 = vld [vmem:[%s5 + $0x40] sm:$0xff]
    %v45 = vld [vmem:[%s5 + $0x48] sm:$0xff]
    %v46 = vld [vmem:[%s5 + $0x50] sm:$0xff]
    %v47 = vld [vmem:[%s5 + $0x58] sm:$0xff]
    %v48 = vld [vmem:[%s5 + $0x60] sm:$0xff]
    %v49 = vld [vmem:[%s5 + $0x68] sm:$0xff]
    %v50 = vld [vmem:[%s5 + $0x70] sm:$0xff]
    %v51 = vld [vmem:[%s5 + $0x78] sm:$0xff]
    %v52 = vld [vmem:[%s5 + $0x80] sm:$0xff]
    %v53 = vld [vmem:[%s5 + $0x88] sm:$0xff]
    %v54 = vld [vmem:[%s5 + $0x90] sm:$0xff]
    %v55 = vld [vmem:[%s5 + $0x98] sm:$0xff]
    %v56 = vld [vmem:[%s5 + $0xa0] sm:$0xff]
    %v57 = vld [vmem:[%s5 + $0xa8] sm:$0xff]
    %v58 = vld [vmem:[%s5 + $0xb0] sm:$0xff]
    %v59 = vld [vmem:[%s5 + $0xb8] sm:$0xff]
    %v60 = vld [vmem:[%s5 + $0xc0] sm:$0xff]
    %v61 = vld [vmem:[%s5 + $0xc8] sm:$0xff]
    %v62 = vld [vmem:[%s5 + $0xd0] sm:$0xff]
    %v63 = vld [vmem:[%s5 + $0xd8] sm:$0xff]
    %v64 = vld [vmem:[%s5 + $0xe0] sm:$0xff]
    %v65 = vld [vmem:[%s5 + $0xe8] sm:$0xff]
    %v66 = vld [vmem:[%s5 + $0xf0] sm:$0xff]
    %v67 = vld [vmem:[%s5 + $0xf8] sm:$0xff]
    %vm68 = vcmask 261120
    %v70 = vsel %vm68, %v24, 0
    %72 = vmatpush.msra.mxu0 0.0
    %73 = vmatpush.msra.mxu0 0.0
    %74 = vmatpush.msra.mxu0 0.0
    %75 = vmatpush.msra.mxu0 0.0
    %76 = vmatpush.msra.mxu0 0.0
    %77 = vmatpush.msra.mxu0 0.0
    %78 = vmatpush.msra.mxu0 0.0
    %79 = vmatpush.msra.mxu0 0.0
    %80 = vmatpush.msra.mxu0 0.0
    %81 = vmatpush.msra.mxu0 0.0
    %82 = vmatpush.msra.mxu0 0.0
    %83 = vmatpush.msra.mxu0 0.0
    %84 = vmatpush.msra.mxu0 %v32
    %85 = vmatpush.msra.mxu0 %v30
    %86 = vmatpush.msra.mxu0 %v28
    %87 = vmatpush.msra.mxu0 %v26
    %88 = vmatmul.f32.gmra.mxu0 %v70
    %v89 = vpop.f32.mrf.mxu0
    %v90 = vadd.f32 0.0, %v89
    %91 = vdwg.mxu0
    %92 = vmatpush.msra.mxu0 0.0
    %93 = vmatpush.msra.mxu0 0.0
    %94 = vmatpush.msra.mxu0 0.0
    %95 = vmatpush.msra.mxu0 0.0
    %96 = vmatpush.msra.mxu0 0.0
    %97 = vmatpush.msra.mxu0 0.0
    %98 = vmatpush.msra.mxu0 0.0
    %99 = vmatpush.msra.mxu0 0.0
    %100 = vmatpush.msra.mxu0 0.0
    %101 = vmatpush.msra.mxu0 0.0
    %102 = vmatpush.msra.mxu0 0.0
    %103 = vmatpush.msra.mxu0 0.0
    %104 = vmatpush.msra.mxu0 %v33
    %105 = vmatpush.msra.mxu0 %v31
    %106 = vmatpush.msra.mxu0 %v29
    %107 = vmatpush.msra.mxu0 %v27
    %108 = vmatmul.f32.gmra.mxu0 %v70
    %v109 = vpop.f32.mrf.mxu0
    %v110 = vadd.f32 0.0, %v109
    %111 = vdwg.mxu0
    %v114 = vrot.slane %v110, 6
    %vm115 = vcmask 1041408
    %v116 = vsel %vm115, %v90, %v114
    %v118 = vmul.f32 %v25, %v116
    %120 = vst [vmem:[#allocation1] ss:$4 sm:$0xff] %v118
    %v121 = vld.sshfl [vmem:[#allocation1] sm:$0xff pattern:$0x73625140]
    %v122 = vld.sshfl [vmem:[#allocation1 + $0x8] sm:$0xff pattern:$0x73625140]
    %125 = vmatpush.msra.mxu0 %v51
    %126 = vmatpush.msra.mxu0 %v50
    %127 = vmatpush.msra.mxu0 %v49
    %128 = vmatpush.msra.mxu0 %v48
    %129 = vmatpush.msra.mxu0 %v47
    %130 = vmatpush.msra.mxu0 %v46
    %131 = vmatpush.msra.mxu0 %v45
    %132 = vmatpush.msra.mxu0 %v44
    %133 = vmatpush.msra.mxu0 %v43
    %134 = vmatpush.msra.mxu0 %v42
    %135 = vmatpush.msra.mxu0 %v41
    %136 = vmatpush.msra.mxu0 %v40
    %137 = vmatpush.msra.mxu0 %v39
    %138 = vmatpush.msra.mxu0 %v38
    %139 = vmatpush.msra.mxu0 %v37
    %140 = vmatpush.msra.mxu0 %v36
    %141 = vmatmul.f32.gmra.mxu0 %v121
    %v142 = vpop.f32.mrf.mxu0
    %v143 = vadd.f32 0.0, %v142
    %144 = vdwg.mxu0
    %145 = vmatpush.msra.mxu0 %v67
    %146 = vmatpush.msra.mxu0 %v66
    %147 = vmatpush.msra.mxu0 %v65
    %148 = vmatpush.msra.mxu0 %v64
    %149 = vmatpush.msra.mxu0 %v63
    %150 = vmatpush.msra.mxu0 %v62
    %151 = vmatpush.msra.mxu0 %v61
    %152 = vmatpush.msra.mxu0 %v60
    %153 = vmatpush.msra.mxu0 %v59
    %154 = vmatpush.msra.mxu0 %v58
    %155 = vmatpush.msra.mxu0 %v57
    %156 = vmatpush.msra.mxu0 %v56
    %157 = vmatpush.msra.mxu0 %v55
    %158 = vmatpush.msra.mxu0 %v54
    %159 = vmatpush.msra.mxu0 %v53
    %160 = vmatpush.msra.mxu0 %v52
    %161 = vmatmul.f32.gmra.mxu0 %v122
    %v162 = vpop.f32.mrf.mxu0
    %v163 = vadd.f32 %v143, %v162
    %164 = vdwg.mxu0
    %v165 = vmul.f32 %v163, 0.17677669
    %vm166 = vcmask 58368
    %v167 = vsel %vm166, %v165, -inf
    %168 = vmax.xlane.f32.xlu0 %v167
    %v169 = vpop.xlane.xlu0 %168
    %v170 = vsub.f32 %v165, %v169
    %v171 = vmul.f32 %v170, 1.442695
    %v172 = vpow.pop %v171
    %v173 = vsel %vm166, %v172, 0.0
    %174 = vadd.xlane.f32.xlu0 %v173
    %v175 = vpop.xlane.xlu0 %174
    %v176 = vrcp.pop %v175
    %v177 = vmul.f32 %v172, %v176
    %vm178 = vcmask 64512
    %v180 = vsel %vm178, %v177, 0
    %182 = vmatpush.msra.mxu0 0.0
    %183 = vmatpush.msra.mxu0 0.0
    %184 = vmatpush.msra.mxu0 0.0
    %185 = vmatpush.msra.mxu0 0.0
    %186 = vmatpush.msra.mxu0 0.0
    %187 = vmatpush.msra.mxu0 0.0
    %188 = vmatpush.msra.mxu0 0.0
    %189 = vmatpush.msra.mxu0 0.0
    %190 = vmatpush.msra.mxu0 0.0
    %191 = vmatpush.msra.mxu0 0.0
    %192 = vmatpush.msra.mxu0 0.0
    %193 = vmatpush.msra.mxu0 0.0
    %194 = vmatpush.msra.mxu0 0.0
    %195 = vmatpush.msra.mxu0 0.0
    %196 = vmatpush.msra.mxu0 0.0
    %197 = vmatpush.msra.mxu0 %v34
    %198 = vmatmul.f32.gmra.mxu0 %v180
    %v199 = vpop.f32.mrf.mxu0
    %v200 = vadd.f32 0.0, %v199
    %201 = vdwg.mxu0
    %202 = vmatpush.msra.mxu0 0.0
    %203 = vmatpush.msra.mxu0 0.0
    %204 = vmatpush.msra.mxu0 0.0
    %205 = vmatpush.msra.mxu0 0.0
    %206 = vmatpush.msra.mxu0 0.0
    %207 = vmatpush.msra.mxu0 0.0
    %208 = vmatpush.msra.mxu0 0.0
    %209 = vmatpush.msra.mxu0 0.0
    %210 = vmatpush.msra.mxu0 0.0
    %211 = vmatpush.msra.mxu0 0.0
    %212 = vmatpush.msra.mxu0 0.0
    %213 = vmatpush.msra.mxu0 0.0
    %214 = vmatpush.msra.mxu0 0.0
    %215 = vmatpush.msra.mxu0 0.0
    %216 = vmatpush.msra.mxu0 0.0
    %217 = vmatpush.msra.mxu0 %v35
    %218 = vmatmul.f32.gmra.mxu0 %v180
    %v219 = vpop.f32.mrf.mxu0
    %v220 = vadd.f32 0.0, %v219
    %221 = vdwg.mxu0
    %v222 = vld [vmem:[%s2] sm:$0xf]
    %224 = vst [vmem:[#allocation1] ss:$4 sm:$0xff] %v222
    %v225 = vld.sshfl [vmem:[#allocation1] sm:$0xff pattern:$0x73625140]
    %v226 = vld.sshfl [vmem:[#allocation1 + $0x8] sm:$0xff pattern:$0x73625140]
    %v229 = vmul.f32 %v200, %v225
    %v230 = vmul.f32 %v220, %v226
    %v233 = vrot.slane %v230, 6
    %v234 = vsel %vm115, %v229, %v233
    %236 = vst [vmem:[#allocation2] sm:$0xf] %v234
    // Predicated region
    $region26: #{tpu_custom_call.1} parent=1 // pred_check
      _
    $region27: #{tpu_custom_call.1} parent=1 // pred_check_branch
      %238 = sbr.rel (0) target = $region29
    $region28: #{tpu_custom_call.1} parent=1 // pred_region
      %240 = vsyncadd [#allocation3], 0
      %s242 = sshll.u32 [#allocation2], 4
      %s243 = int_to_ptr.vmem [resolvable:$true] %s242
      %s244 = sshll.u32 %s6, 4
      %s245 = int_to_ptr.hbm [resolvable:$true] %s244
      %247 = dma.vmem_to_hbm [thread:$0]  %s243, 64, %s245, [#allocation3]
    $region29: #{tpu_custom_call.1} parent=1 // pred_fallthru
      _
    // Predicated region
    $region30: #{tpu_custom_call.1} parent=1 // pred_check
      _
    $region31: #{tpu_custom_call.1} parent=1 // pred_check_branch
      %249 = sbr.rel (0) target = $region33
    $region32: #{tpu_custom_call.1} parent=1 // pred_region
      %251 = dma.done [#allocation3], 64
    $region33: #{tpu_custom_call.1} parent=1 // pred_fallthru
      _
    %252 = vsyncpa [#allocation3], 1

</llo_original>
